<compile_context>
chip_gen: v5e
topology: v5e:2x2
jax: 0.10.0
libtpu: 0.0.40
codegen_flags: <defaults>
</compile_context>

<pallas_src>
import math
import functools

import jax
import jax.numpy as jnp
from jax.experimental import pallas as pl
from jax.experimental.pallas import tpu as pltpu


def _round_up(x, m):
    return (x + m - 1) // m * m


def _pick_tile(n, preferred, align=128):
    """Largest divisor of n that is <= preferred and a multiple of `align`
    (lane/MXU friendly); falls back to the full extent n when none exists."""
    cap = min(preferred, n)
    t = (cap // align) * align
    while t >= align:
        if n % t == 0:
            return t
        t -= align
    return n


def _pick_row_tile(n, preferred):
    """Row tile for the output 'parallel' axis.  Prefer >= 2 row tiles when n
    allows it so both v7x TensorCores get work (single-TC v5e/v6e unaffected)."""
    t = _pick_tile(n, preferred)
    if t == n and n >= 256:
        t2 = _pick_tile(n, n // 2)
        if t2 < n:
            return t2
    return t


# ---------------- Pass 1: support = X @ W  (computed exactly once) ----------

def support_kernel(x_ref, w_ref, o_ref):
    o_ref[...] = jnp.dot(
        x_ref[...], w_ref[...], preferred_element_type=jnp.float32
    ).astype(o_ref.dtype)


# ---------------- Pass 2: out = adj @ support + bias ------------------------

def aggregate_single_kernel(adj_ref, s_ref, b_ref, o_ref):
    # Whole contraction in one MXU pass: no VMEM accumulator round trip.
    o_ref[...] = (
        jnp.dot(adj_ref[...], s_ref[...], preferred_element_type=jnp.float32)
        + b_ref[...]
    ).astype(o_ref.dtype)


def aggregate_kernel(adj_ref, s_ref, b_ref, o_ref, acc_ref, *, tile_k, resident):
    # K-tiled contraction over N with an f32 VMEM accumulator.
    k = pl.program_id(1)

    @pl.when(k == 0)
    def _():
        acc_ref[...] = jnp.zeros_like(acc_ref)

    if resident:
        # support is fully VMEM-resident: slice the K-chunk in place
        # (zero repeated HBM traffic for support).
        s = s_ref[pl.ds(pl.multiple_of(k * tile_k, 128), tile_k), :]
    else:
        s = s_ref[...]

    # No in-kernel casts: adj and support arrive in the same compute dtype;
    # accumulation is always f32 on the MXU.
    acc_ref[...] += jnp.dot(adj_ref[...], s, preferred_element_type=jnp.float32)

    @pl.when(k == pl.num_programs(1) - 1)
    def _():
        o_ref[...] = (acc_ref[...] + b_ref[...]).astype(o_ref.dtype)


@functools.partial(
    jax.jit,
    static_argnames=("row_tile", "k_tile", "adj_dtype", "vmem_budget"))
def graph_convolution(x, adj, weight, bias, *, row_tile=512, k_tile=2048,
                      adj_dtype=jnp.float32, vmem_budget=24 * 1024 * 1024):
    """GCN layer forward: adj @ (x @ weight) + bias.

    adj_dtype=jnp.bfloat16 is an opt-in fast path at scale (halves the N^2 adj
    HBM stream, bf16 MXU mode).  Default float32 matches the PyTorch
    `adj.float()` semantics exactly.  Accumulation is f32 either way.
    """
    n, f_in = x.shape
    f_out = weight.shape[1]
    assert adj.shape == (n, n)

    compute_dtype = jnp.dtype(adj_dtype)
    c_bytes = compute_dtype.itemsize

    # Pad F_out to a lane-dense multiple of 128: unmasked stores, full MXU N.
    f_pad = _round_up(f_out, 128)
    w_p = jnp.pad(weight.astype(jnp.float32), ((0, 0), (0, f_pad - f_out)))
    b_p = jnp.pad(bias.reshape(1, f_out).astype(jnp.float32),
                  ((0, 0), (0, f_pad - f_out)))

    x = x.astype(jnp.float32)
    adj = adj.astype(compute_dtype)

    # ---- Pass 1: support = X @ W (once).  F_in is the MXU contraction dim and
    # is passed full-extent (legal for any F_in); pass 1 is a tiny fraction of
    # the total FLOPs, so no F_in padding pass is spent on it.
    tile_s = _pick_tile(n, 512)
    support = pl.pallas_call(
        support_kernel,
        out_shape=jax.ShapeDtypeStruct((n, f_pad), compute_dtype),
        grid_spec=pltpu.PrefetchScalarGridSpec(
            num_scalar_prefetch=0,
            grid=(n // tile_s,),
            in_specs=[
                pl.BlockSpec((tile_s, f_in), lambda i: (i, 0)),   # X row-tile
                pl.BlockSpec((f_in, f_pad), lambda i: (0, 0)),    # full W (resident)
            ],
            out_specs=pl.BlockSpec((tile_s, f_pad), lambda i: (i, 0)),
        ),
        compiler_params=pltpu.CompilerParams(
            dimension_semantics=("parallel",)),
    )(x, w_p)

    # ---- Pass 2 tiling.  HBM-bound on the N^2 adj stream -> big tiles, but the
    # working set is budgeted to fit v7x's 32 MiB scoped-VMEM default
    # (64 MiB physical); v5e/v6e have more headroom.
    tile_m = _pick_row_tile(n, row_tile)
    tile_k = _pick_tile(n, k_tile)

    def vmem_use(tm, tk, resident):
        adj_buf = 2 * tm * tk * c_bytes                          # dbl-buffered adj
        sup_buf = 2 * (n if resident else tk) * f_pad * c_bytes  # support
        out_buf = 2 * tm * f_pad * 4                             # output tile
        acc_buf = 0 if tk == n else tm * f_pad * 4               # f32 accumulator
        return adj_buf + sup_buf + out_buf + acc_buf + 2 * f_pad * 4

    while vmem_use(tile_m, tile_k, False) > vmem_budget:
        smaller = _pick_tile(n, tile_k // 2)
        if smaller >= tile_k:
            break   # TODO(synk): non-128-divisible huge N keeps full-extent tiles.
        tile_k = smaller

    # Keep support fully VMEM-resident when it fits: DMA'd once for the whole
    # pass instead of re-streamed once per row-tile.
    resident = vmem_use(tile_m, tile_k, True) <= vmem_budget

    k_steps = n // tile_k
    m_steps = n // tile_m

    if k_steps == 1:
        # Single K step: whole contraction per row-tile, no accumulator.
        out = pl.pallas_call(
            aggregate_single_kernel,
            out_shape=jax.ShapeDtypeStruct((n, f_pad), jnp.float32),
            grid_spec=pltpu.PrefetchScalarGridSpec(
                num_scalar_prefetch=0,
                grid=(m_steps,),
                in_specs=[
                    pl.BlockSpec((tile_m, n), lambda i: (i, 0)),   # adj row stripe
                    pl.BlockSpec((n, f_pad), lambda i: (0, 0)),    # support (resident)
                    pl.BlockSpec((1, f_pad), lambda i: (0, 0)),    # bias
                ],
                out_specs=pl.BlockSpec((tile_m, f_pad), lambda i: (i, 0)),
            ),
            compiler_params=pltpu.CompilerParams(
                dimension_semantics=("parallel",)),
        )(adj, support, b_p)
    else:
        if resident:
            s_spec = pl.BlockSpec((n, f_pad), lambda i, k: (0, 0))      # DMA'd once
        else:
            s_spec = pl.BlockSpec((tile_k, f_pad), lambda i, k: (k, 0)) # streamed
        kernel = functools.partial(aggregate_kernel, tile_k=tile_k,
                                   resident=resident)
        out = pl.pallas_call(
            kernel,
            out_shape=jax.ShapeDtypeStruct((n, f_pad), jnp.float32),
            grid_spec=pltpu.PrefetchScalarGridSpec(
                num_scalar_prefetch=0,
                grid=(m_steps, k_steps),
                in_specs=[
                    pl.BlockSpec((tile_m, tile_k), lambda i, k: (i, k)),  # adj tile
                    s_spec,                                               # support
                    pl.BlockSpec((1, f_pad), lambda i, k: (0, 0)),        # bias
                ],
                out_specs=pl.BlockSpec((tile_m, f_pad), lambda i, k: (i, 0)),
                scratch_shapes=[pltpu.VMEM((tile_m, f_pad), jnp.float32)],
            ),
            compiler_params=pltpu.CompilerParams(
                dimension_semantics=("parallel", "arbitrary")),
        )(adj, support, b_p)

    return out[:, :f_out]


if __name__ == "__main__":
    # Small, TPU-friendly sizes consistent with the module's forward:
    #   N nodes = 128, in_features = 64, out_features = 32.
    N, F_IN, F_OUT = 128, 64, 32

    key = jax.random.PRNGKey(0)
    k_x, k_adj, k_w, k_b = jax.random.split(key, 4)

    x = jax.random.normal(k_x, (N, F_IN), dtype=jnp.float32)

    # Symmetric row-normalized adjacency (typical GCN preprocessing).
    a = (jax.random.uniform(k_adj, (N, N)) > 0.8).astype(jnp.float32)
    a = jnp.maximum(a, a.T) + jnp.eye(N, dtype=jnp.float32)
    adj = a / jnp.sum(a, axis=1, keepdims=True)

    # Deterministic parameter init matching reset_parameters():
    #   uniform(-stdv, stdv), stdv = 1/sqrt(out_features)
    stdv = 1.0 / math.sqrt(F_OUT)
    weight = jax.random.uniform(k_w, (F_IN, F_OUT),
                                minval=-stdv, maxval=stdv, dtype=jnp.float32)
    bias = jax.random.uniform(k_b, (F_OUT,),
                              minval=-stdv, maxval=stdv, dtype=jnp.float32)

    # Demo shape exercises the single-K fast path.
    out = jax.block_until_ready(graph_convolution(x, adj, weight, bias))
    ref = adj @ (x @ weight) + bias
    assert out.shape == (N, F_OUT)
    assert jnp.allclose(out, ref, atol=1e-4, rtol=1e-4), "mismatch vs reference"

    # Also exercise the K-tiled accumulator paths (resident and streamed
    # support) at a still-small size, to keep all code paths validated.
    N2 = 512
    k_x2, k_adj2 = jax.random.split(jax.random.PRNGKey(1))
    x2 = jax.random.normal(k_x2, (N2, F_IN), dtype=jnp.float32)
    a2 = (jax.random.uniform(k_adj2, (N2, N2)) > 0.9).astype(jnp.float32)
    a2 = jnp.maximum(a2, a2.T) + jnp.eye(N2, dtype=jnp.float32)
    adj2 = a2 / jnp.sum(a2, axis=1, keepdims=True)
    ref2 = adj2 @ (x2 @ weight) + bias

    out_res = jax.block_until_ready(
        graph_convolution(x2, adj2, weight, bias, row_tile=256, k_tile=256))
    assert jnp.allclose(out_res, ref2, atol=1e-4, rtol=1e-4), "resident path mismatch"

    out_str = jax.block_until_ready(
        graph_convolution(x2, adj2, weight, bias, row_tile=256, k_tile=256,
                          vmem_budget=1 * 1024 * 1024))
    assert jnp.allclose(out_str, ref2, atol=1e-4, rtol=1e-4), "streamed path mismatch"

    print("KERNEL_OK")
</pallas_src>

<mosaic_0001>
module attributes {stable_mosaic.version = 11 : i64} {
  func.func @support_kernel(%arg0: i32, %arg1: memref<128x64xf32, #tpu.memory_space<vmem>>, %arg2: memref<64x128xf32, #tpu.memory_space<vmem>>, %arg3: memref<128x128xf32, #tpu.memory_space<vmem>>) attributes {dimension_semantics = [#tpu.dimension_semantics<parallel>], iteration_bounds = array<i64: 1>, scalar_prefetch = 0 : i64, scratch_operands = 0 : i64, tpu.core_type = #tpu.core_type<tc>, window_params = [{transform_indices = @transform_0, window_bounds = array<i64: 128, 64>}, {pipeline_mode = #tpu.pipeline_mode<synchronous>, transform_indices = @transform_1, window_bounds = array<i64: 64, 128>}, {transform_indices = @transform_2, window_bounds = array<i64: 128, 128>}]} {
    %c0 = arith.constant 0 : index
    %c0_0 = arith.constant 0 : index
    %0 = vector.load %arg1[%c0, %c0_0] : memref<128x64xf32, #tpu.memory_space<vmem>>, vector<128x64xf32>
    %c0_1 = arith.constant 0 : index
    %c0_2 = arith.constant 0 : index
    %1 = vector.load %arg2[%c0_1, %c0_2] : memref<64x128xf32, #tpu.memory_space<vmem>>, vector<64x128xf32>
    %cst = arith.constant dense<0.000000e+00> : vector<128x128xf32>
    %2 = tpu.matmul %0, %1, %cst {dimension_numbers = #tpu.dot_dimension_numbers<[1], [0], [0], [1], [0, 0, 1, 1], [], []>} : vector<128x64xf32>, vector<64x128xf32>, vector<128x128xf32> -> vector<128x128xf32>
    %c0_3 = arith.constant 0 : index
    %c0_4 = arith.constant 0 : index
    %3 = vector.load %arg3[%c0_3, %c0_4] : memref<128x128xf32, #tpu.memory_space<vmem>>, vector<128x128xf32>
    tpu.vector_store %arg3[%c0_3, %c0_4], %2 {strides = array<i32>} : memref<128x128xf32, #tpu.memory_space<vmem>>, vector<128x128xf32>,
    return
  }
  func.func @transform_0(%arg0: i32) -> (i32, i32) {
    %c0_i32 = arith.constant 0 : i32
    %c0_i32_0 = arith.constant 0 : i32
    return %arg0, %c0_i32 : i32, i32
  }
  func.func @transform_1(%arg0: i32) -> (i32, i32) {
    %c0_i32 = arith.constant 0 : i32
    %c0_i32_0 = arith.constant 0 : i32
    %c0_i32_1 = arith.constant 0 : i32
    return %c0_i32, %c0_i32_0 : i32, i32
  }
  func.func @transform_2(%arg0: i32) -> (i32, i32) {
    %c0_i32 = arith.constant 0 : i32
    %c0_i32_0 = arith.constant 0 : i32
    return %arg0, %c0_i32 : i32, i32
  }
}

module attributes {stable_mosaic.version = 11 : i64} {
  func.func @aggregate_single_kernel(%arg0: i32, %arg1: memref<128x128xf32, #tpu.memory_space<vmem>>, %arg2: memref<128x128xf32, #tpu.memory_space<vmem>>, %arg3: memref<1x128xf32, #tpu.memory_space<vmem>>, %arg4: memref<128x128xf32, #tpu.memory_space<vmem>>) attributes {dimension_semantics = [#tpu.dimension_semantics<parallel>], iteration_bounds = array<i64: 1>, scalar_prefetch = 0 : i64, scratch_operands = 0 : i64, tpu.core_type = #tpu.core_type<tc>, window_params = [{transform_indices = @transform_0, window_bounds = array<i64: 128, 128>}, {pipeline_mode = #tpu.pipeline_mode<synchronous>, transform_indices = @transform_1, window_bounds = array<i64: 128, 128>}, {pipeline_mode = #tpu.pipeline_mode<synchronous>, transform_indices = @transform_2, window_bounds = array<i64: 1, 128>}, {transform_indices = @transform_3, window_bounds = array<i64: 128, 128>}]} {
    %c0 = arith.constant 0 : index
    %c0_0 = arith.constant 0 : index
    %0 = vector.load %arg1[%c0, %c0_0] : memref<128x128xf32, #tpu.memory_space<vmem>>, vector<128x128xf32>
    %c0_1 = arith.constant 0 : index
    %c0_2 = arith.constant 0 : index
    %1 = vector.load %arg2[%c0_1, %c0_2] : memref<128x128xf32, #tpu.memory_space<vmem>>, vector<128x128xf32>
    %cst = arith.constant dense<0.000000e+00> : vector<128x128xf32>
    %2 = tpu.matmul %0, %1, %cst {dimension_numbers = #tpu.dot_dimension_numbers<[1], [0], [0], [1], [0, 0, 1, 1], [], []>} : vector<128x128xf32>, vector<128x128xf32>, vector<128x128xf32> -> vector<128x128xf32>
    %c0_3 = arith.constant 0 : index
    %c0_4 = arith.constant 0 : index
    %3 = vector.load %arg3[%c0_3, %c0_4] : memref<1x128xf32, #tpu.memory_space<vmem>>, vector<1x128xf32>
    %4 = vector.broadcast %3 : vector<1x128xf32> to vector<128x128xf32>
    %5 = arith.addf %2, %4 : vector<128x128xf32>
    %c0_5 = arith.constant 0 : index
    %c0_6 = arith.constant 0 : index
    %6 = vector.load %arg4[%c0_5, %c0_6] : memref<128x128xf32, #tpu.memory_space<vmem>>, vector<128x128xf32>
    tpu.vector_store %arg4[%c0_5, %c0_6], %5 {strides = array<i32>} : memref<128x128xf32, #tpu.memory_space<vmem>>, vector<128x128xf32>,
    return
  }
  func.func @transform_0(%arg0: i32) -> (i32, i32) {
    %c0_i32 = arith.constant 0 : i32
    %c0_i32_0 = arith.constant 0 : i32
    return %arg0, %c0_i32 : i32, i32
  }
  func.func @transform_1(%arg0: i32) -> (i32, i32) {
    %c0_i32 = arith.constant 0 : i32
    %c0_i32_0 = arith.constant 0 : i32
    %c0_i32_1 = arith.constant 0 : i32
    return %c0_i32, %c0_i32_0 : i32, i32
  }
  func.func @transform_2(%arg0: i32) -> (i32, i32) {
    %c0_i32 = arith.constant 0 : i32
    %c0_i32_0 = arith.constant 0 : i32
    %c0_i32_1 = arith.constant 0 : i32
    return %c0_i32, %c0_i32_0 : i32, i32
  }
  func.func @transform_3(%arg0: i32) -> (i32, i32) {
    %c0_i32 = arith.constant 0 : i32
    %c0_i32_0 = arith.constant 0 : i32
    return %arg0, %c0_i32 : i32, i32
  }
}

</mosaic_0001>

<llo_original>
// kernel: graph_convolution.3
$region0: #{graph_convolution.3}
  #allocation0 [shape = 'u32[]', space=smem, size = 0x4, offset = 0x4, fixed_abs, tag = 'smem constant byte address 0x4 - core index']
  #allocation1 [shape = 'u32[72,128]{1,0:T(1,128)}', space=vmem, size = 0x9000, scoped, tag = 'internal scratch']
  %s0 = inlined_call_operand.vmem [shape: f32[128,128], index: 0, kind: input, shape index: {}]
  %s1 = inlined_call_operand.vmem [shape: f32[128,128], index: 1, kind: input, shape index: {}]
  %s2 = inlined_call_operand.vmem [shape: f32[1,128], index: 2, kind: input, shape index: {}]
  %s3 = inlined_call_operand.vmem [shape: f32[128,128], index: 3, kind: output, shape index: {}]
  %s4 = sld [smem:[#allocation0]]
  $region22: #{graph_convolution.3} parent=0
    _
  %s6 = ssub.s32 1, %s4
  %s7 = scalar_select 0, %s6, %s4
  // Predicated region
  $region2: #{graph_convolution.3} parent=0 // pred_check
    _
  $region3: #{graph_convolution.3} parent=0 // pred_check_branch
    %9 = sbr.rel (0) target = $region5
  $region4: #{graph_convolution.3} parent=0 // pred_region
    _
  $region5: #{graph_convolution.3} parent=0 // pred_fallthru
    _
  // Predicated region
  $region6: #{graph_convolution.3} parent=0 // pred_check
    _
  $region7: #{graph_convolution.3} parent=0 // pred_check_branch
    %11 = sbr.rel (0) target = $region9
  $region8: #{graph_convolution.3} parent=0 // pred_region
    _
  $region9: #{graph_convolution.3} parent=0 // pred_fallthru
    _
  // Predicated region
  $region10: #{graph_convolution.3} parent=0 // pred_check
    _
  $region11: #{graph_convolution.3} parent=0 // pred_check_branch
    %13 = sbr.rel (0) target = $region13
  $region12: #{graph_convolution.3} parent=0 // pred_region
    _
  $region13: #{graph_convolution.3} parent=0 // pred_fallthru
    _
  %v14 = vld [vmem:[%s0] sm:$0xff]
  %v15 = vld [vmem:[%s0 + $0x8] sm:$0xff]
  %v16 = vld [vmem:[%s0 + $0x10] sm:$0xff]
  %v17 = vld [vmem:[%s0 + $0x18] sm:$0xff]
  %v18 = vld [vmem:[%s0 + $0x20] sm:$0xff]
  %v19 = vld [vmem:[%s0 + $0x28] sm:$0xff]
  %v20 = vld [vmem:[%s0 + $0x30] sm:$0xff]
  %v21 = vld [vmem:[%s0 + $0x38] sm:$0xff]
  %v22 = vld [vmem:[%s0 + $0x40] sm:$0xff]
  %v23 = vld [vmem:[%s0 + $0x48] sm:$0xff]
  %v24 = vld [vmem:[%s0 + $0x50] sm:$0xff]
  %v25 = vld [vmem:[%s0 + $0x58] sm:$0xff]
  %v26 = vld [vmem:[%s0 + $0x60] sm:$0xff]
  %v27 = vld [vmem:[%s0 + $0x68] sm:$0xff]
  %v28 = vld [vmem:[%s0 + $0x70] sm:$0xff]
  %v29 = vld [vmem:[%s0 + $0x78] sm:$0xff]
  %v30 = vld [vmem:[%s1] sm:$0xff]
  %v31 = vld [vmem:[%s1 + $0x8] sm:$0xff]
  %v32 = vld [vmem:[%s1 + $0x10] sm:$0xff]
  %v33 = vld [vmem:[%s1 + $0x18] sm:$0xff]
  %v34 = vld [vmem:[%s1 + $0x20] sm:$0xff]
  %v35 = vld [vmem:[%s1 + $0x28] sm:$0xff]
  %v36 = vld [vmem:[%s1 + $0x30] sm:$0xff]
  %v37 = vld [vmem:[%s1 + $0x38] sm:$0xff]
  %v38 = vld [vmem:[%s1 + $0x40] sm:$0xff]
  %v39 = vld [vmem:[%s1 + $0x48] sm:$0xff]
  %v40 = vld [vmem:[%s1 + $0x50] sm:$0xff]
  %v41 = vld [vmem:[%s1 + $0x58] sm:$0xff]
  %v42 = vld [vmem:[%s1 + $0x60] sm:$0xff]
  %v43 = vld [vmem:[%s1 + $0x68] sm:$0xff]
  %v44 = vld [vmem:[%s1 + $0x70] sm:$0xff]
  %v45 = vld [vmem:[%s1 + $0x78] sm:$0xff]
  %v46 = vld [vmem:[%s2] sm:$0x1]
  %v48 = vperm.slane %v46, 0
  %50 = vmatpush.msra.mxu0 %v45
  %51 = vmatpush.msra.mxu0 %v44
  %52 = vmatpush.msra.mxu0 %v43
  %53 = vmatpush.msra.mxu0 %v42
  %54 = vmatpush.msra.mxu0 %v41
  %55 = vmatpush.msra.mxu0 %v40
  %56 = vmatpush.msra.mxu0 %v39
  %57 = vmatpush.msra.mxu0 %v38
  %58 = vmatpush.msra.mxu0 %v37
  %59 = vmatpush.msra.mxu0 %v36
  %60 = vmatpush.msra.mxu0 %v35
  %61 = vmatpush.msra.mxu0 %v34
  %62 = vmatpush.msra.mxu0 %v33
  %63 = vmatpush.msra.mxu0 %v32
  %64 = vmatpush.msra.mxu0 %v31
  %65 = vmatpush.msra.mxu0 %v30
  %66 = vmatmul.f32.gmra.mxu0 %v14
  %v67 = vpop.f32.mrf.mxu0
  %v68 = vadd.f32 %v48, %v67
  %69 = vmatmul.f32.gmra.mxu0 %v15
  %v70 = vpop.f32.mrf.mxu0
  %v71 = vadd.f32 %v48, %v70
  %72 = vmatmul.f32.gmra.mxu0 %v16
  %v73 = vpop.f32.mrf.mxu0
  %v74 = vadd.f32 %v48, %v73
  %75 = vmatmul.f32.gmra.mxu0 %v17
  %v76 = vpop.f32.mrf.mxu0
  %v77 = vadd.f32 %v48, %v76
  %78 = vmatmul.f32.gmra.mxu0 %v18
  %v79 = vpop.f32.mrf.mxu0
  %v80 = vadd.f32 %v48, %v79
  %81 = vmatmul.f32.gmra.mxu0 %v19
  %v82 = vpop.f32.mrf.mxu0
  %v83 = vadd.f32 %v48, %v82
  %84 = vmatmul.f32.gmra.mxu0 %v20
  %v85 = vpop.f32.mrf.mxu0
  %v86 = vadd.f32 %v48, %v85
  %87 = vmatmul.f32.gmra.mxu0 %v21
  %v88 = vpop.f32.mrf.mxu0
  %v89 = vadd.f32 %v48, %v88
  %90 = vmatmul.f32.gmra.mxu0 %v22
  %v91 = vpop.f32.mrf.mxu0
  %v92 = vadd.f32 %v48, %v91
  %93 = vmatmul.f32.gmra.mxu0 %v23
  %v94 = vpop.f32.mrf.mxu0
  %v95 = vadd.f32 %v48, %v94
  %96 = vmatmul.f32.gmra.mxu0 %v24
  %v97 = vpop.f32.mrf.mxu0
  %v98 = vadd.f32 %v48, %v97
  %99 = vmatmul.f32.gmra.mxu0 %v25
  %v100 = vpop.f32.mrf.mxu0
  %v101 = vadd.f32 %v48, %v100
  %102 = vmatmul.f32.gmra.mxu0 %v26
  %v103 = vpop.f32.mrf.mxu0
  %v104 = vadd.f32 %v48, %v103
  %105 = vmatmul.f32.gmra.mxu0 %v27
  %v106 = vpop.f32.mrf.mxu0
  %v107 = vadd.f32 %v48, %v106
  %108 = vmatmul.f32.gmra.mxu0 %v28
  %v109 = vpop.f32.mrf.mxu0
  %v110 = vadd.f32 %v48, %v109
  %111 = vmatmul.f32.gmra.mxu0 %v29
  %v112 = vpop.f32.mrf.mxu0
  %v113 = vadd.f32 %v48, %v112
  %114 = vdwg.mxu0
  %115 = vst [vmem:[%s3] sm:$0xff] %v68
  %116 = vst [vmem:[%s3 + $0x8] sm:$0xff] %v71
  %117 = vst [vmem:[%s3 + $0x10] sm:$0xff] %v74
  %118 = vst [vmem:[%s3 + $0x18] sm:$0xff] %v77
  %119 = vst [vmem:[%s3 + $0x20] sm:$0xff] %v80
  %120 = vst [vmem:[%s3 + $0x28] sm:$0xff] %v83
  %121 = vst [vmem:[%s3 + $0x30] sm:$0xff] %v86
  %122 = vst [vmem:[%s3 + $0x38] sm:$0xff] %v89
  %123 = vst [vmem:[%s3 + $0x40] sm:$0xff] %v92
  %124 = vst [vmem:[%s3 + $0x48] sm:$0xff] %v95
  %125 = vst [vmem:[%s3 + $0x50] sm:$0xff] %v98
  %126 = vst [vmem:[%s3 + $0x58] sm:$0xff] %v101
  %127 = vst [vmem:[%s3 + $0x60] sm:$0xff] %v104
  %128 = vst [vmem:[%s3 + $0x68] sm:$0xff] %v107
  %129 = vst [vmem:[%s3 + $0x70] sm:$0xff] %v110
  %130 = vst [vmem:[%s3 + $0x78] sm:$0xff] %v113
  // Predicated region
  $region14: #{graph_convolution.3} parent=0 // pred_check
    _
  $region15: #{graph_convolution.3} parent=0 // pred_check_branch
    %132 = sbr.rel (0) target = $region17
  $region16: #{graph_convolution.3} parent=0 // pred_region
    _
  $region17: #{graph_convolution.3} parent=0 // pred_fallthru
    _
  // Predicated region
  $region18: #{graph_convolution.3} parent=0 // pred_check
    _
  $region19: #{graph_convolution.3} parent=0 // pred_check_branch
    %134 = sbr.rel (0) target = $region21
  $region20: #{graph_convolution.3} parent=0 // pred_region
    _
  $region21: #{graph_convolution.3} parent=0 // pred_fallthru
    _

// kernel: graph_convolution.2
$region0: #{graph_convolution.2}
  #allocation0 [shape = 'u32[]', space=smem, size = 0x4, offset = 0x4, fixed_abs, tag = 'smem constant byte address 0x4 - core index']
  #allocation1 [shape = 'u32[72,128]{1,0:T(1,128)}', space=vmem, size = 0x9000, scoped, tag = 'internal scratch']
  %s0 = inlined_call_operand.vmem [shape: f32[128,64], index: 0, kind: input, shape index: {}]
  %s1 = inlined_call_operand.vmem [shape: f32[64,128], index: 1, kind: input, shape index: {}]
  %s2 = inlined_call_operand.vmem [shape: f32[128,128], index: 2, kind: output, shape index: {}]
  %s3 = sld [smem:[#allocation0]]
  $region18: #{graph_convolution.2} parent=0
    _
  %s5 = ssub.s32 1, %s3
  %s6 = scalar_select 0, %s5, %s3
  // Predicated region
  $region2: #{graph_convolution.2} parent=0 // pred_check
    _
  $region3: #{graph_convolution.2} parent=0 // pred_check_branch
    %8 = sbr.rel (0) target = $region5
  $region4: #{graph_convolution.2} parent=0 // pred_region
    _
  $region5: #{graph_convolution.2} parent=0 // pred_fallthru
    _
  // Predicated region
  $region6: #{graph_convolution.2} parent=0 // pred_check
    _
  $region7: #{graph_convolution.2} parent=0 // pred_check_branch
    %10 = sbr.rel (0) target = $region9
  $region8: #{graph_convolution.2} parent=0 // pred_region
    _
  $region9: #{graph_convolution.2} parent=0 // pred_fallthru
    _
  %v11 = vld [vmem:[%s0] sm:$0xff]
  %v12 = vld [vmem:[%s0 + $0x8] sm:$0xff]
  %v13 = vld [vmem:[%s0 + $0x10] sm:$0xff]
  %v14 = vld [vmem:[%s0 + $0x18] sm:$0xff]
  %v15 = vld [vmem:[%s0 + $0x20] sm:$0xff]
  %v16 = vld [vmem:[%s0 + $0x28] sm:$0xff]
  %v17 = vld [vmem:[%s0 + $0x30] sm:$0xff]
  %v18 = vld [vmem:[%s0 + $0x38] sm:$0xff]
  %v19 = vld [vmem:[%s0 + $0x40] sm:$0xff]
  %v20 = vld [vmem:[%s0 + $0x48] sm:$0xff]
  %v21 = vld [vmem:[%s0 + $0x50] sm:$0xff]
  %v22 = vld [vmem:[%s0 + $0x58] sm:$0xff]
  %v23 = vld [vmem:[%s0 + $0x60] sm:$0xff]
  %v24 = vld [vmem:[%s0 + $0x68] sm:$0xff]
  %v25 = vld [vmem:[%s0 + $0x70] sm:$0xff]
  %v26 = vld [vmem:[%s0 + $0x78] sm:$0xff]
  %v27 = vld [vmem:[%s1] sm:$0xff]
  %v28 = vld [vmem:[%s1 + $0x8] sm:$0xff]
  %v29 = vld [vmem:[%s1 + $0x10] sm:$0xff]
  %v30 = vld [vmem:[%s1 + $0x18] sm:$0xff]
  %v31 = vld [vmem:[%s1 + $0x20] sm:$0xff]
  %v32 = vld [vmem:[%s1 + $0x28] sm:$0xff]
  %v33 = vld [vmem:[%s1 + $0x30] sm:$0xff]
  %v34 = vld [vmem:[%s1 + $0x38] sm:$0xff]
  %vm35 = vcmask 523264
  %v37 = vsel %vm35, %v11, 0
  %v40 = vsel %vm35, %v12, 0
  %v43 = vsel %vm35, %v13, 0
  %v46 = vsel %vm35, %v14, 0
  %v49 = vsel %vm35, %v15, 0
  %v52 = vsel %vm35, %v16, 0
  %v55 = vsel %vm35, %v17, 0
  %v58 = vsel %vm35, %v18, 0
  %v61 = vsel %vm35, %v19, 0
  %v64 = vsel %vm35, %v20, 0
  %v67 = vsel %vm35, %v21, 0
  %v70 = vsel %vm35, %v22, 0
  %v73 = vsel %vm35, %v23, 0
  %v76 = vsel %vm35, %v24, 0
  %v79 = vsel %vm35, %v25, 0
  %v82 = vsel %vm35, %v26, 0
  %84 = vmatpush.msra.mxu0 0.0
  %85 = vmatpush.msra.mxu0 0.0
  %86 = vmatpush.msra.mxu0 0.0
  %87 = vmatpush.msra.mxu0 0.0
  %88 = vmatpush.msra.mxu0 0.0
  %89 = vmatpush.msra.mxu0 0.0
  %90 = vmatpush.msra.mxu0 0.0
  %91 = vmatpush.msra.mxu0 0.0
  %92 = vmatpush.msra.mxu0 %v34
  %93 = vmatpush.msra.mxu0 %v33
  %94 = vmatpush.msra.mxu0 %v32
  %95 = vmatpush.msra.mxu0 %v31
  %96 = vmatpush.msra.mxu0 %v30
  %97 = vmatpush.msra.mxu0 %v29
  %98 = vmatpush.msra.mxu0 %v28
  %99 = vmatpush.msra.mxu0 %v27
  %100 = vmatmul.f32.gmra.mxu0 %v37
  %v101 = vpop.f32.mrf.mxu0
  %v102 = vadd.f32 0.0, %v101
  %103 = vmatmul.f32.gmra.mxu0 %v40
  %v104 = vpop.f32.mrf.mxu0
  %v105 = vadd.f32 0.0, %v104
  %106 = vmatmul.f32.gmra.mxu0 %v43
  %v107 = vpop.f32.mrf.mxu0
  %v108 = vadd.f32 0.0, %v107
  %109 = vmatmul.f32.gmra.mxu0 %v46
  %v110 = vpop.f32.mrf.mxu0
  %v111 = vadd.f32 0.0, %v110
  %112 = vmatmul.f32.gmra.mxu0 %v49
  %v113 = vpop.f32.mrf.mxu0
  %v114 = vadd.f32 0.0, %v113
  %115 = vmatmul.f32.gmra.mxu0 %v52
  %v116 = vpop.f32.mrf.mxu0
  %v117 = vadd.f32 0.0, %v116
  %118 = vmatmul.f32.gmra.mxu0 %v55
  %v119 = vpop.f32.mrf.mxu0
  %v120 = vadd.f32 0.0, %v119
  %121 = vmatmul.f32.gmra.mxu0 %v58
  %v122 = vpop.f32.mrf.mxu0
  %v123 = vadd.f32 0.0, %v122
  %124 = vmatmul.f32.gmra.mxu0 %v61
  %v125 = vpop.f32.mrf.mxu0
  %v126 = vadd.f32 0.0, %v125
  %127 = vmatmul.f32.gmra.mxu0 %v64
  %v128 = vpop.f32.mrf.mxu0
  %v129 = vadd.f32 0.0, %v128
  %130 = vmatmul.f32.gmra.mxu0 %v67
  %v131 = vpop.f32.mrf.mxu0
  %v132 = vadd.f32 0.0, %v131
  %133 = vmatmul.f32.gmra.mxu0 %v70
  %v134 = vpop.f32.mrf.mxu0
  %v135 = vadd.f32 0.0, %v134
  %136 = vmatmul.f32.gmra.mxu0 %v73
  %v137 = vpop.f32.mrf.mxu0
  %v138 = vadd.f32 0.0, %v137
  %139 = vmatmul.f32.gmra.mxu0 %v76
  %v140 = vpop.f32.mrf.mxu0
  %v141 = vadd.f32 0.0, %v140
  %142 = vmatmul.f32.gmra.mxu0 %v79
  %v143 = vpop.f32.mrf.mxu0
  %v144 = vadd.f32 0.0, %v143
  %145 = vmatmul.f32.gmra.mxu0 %v82
  %v146 = vpop.f32.mrf.mxu0
  %v147 = vadd.f32 0.0, %v146
  %148 = vdwg.mxu0
  %149 = vst [vmem:[%s2] sm:$0xff] %v102
  %150 = vst [vmem:[%s2 + $0x8] sm:$0xff] %v105
  %151 = vst [vmem:[%s2 + $0x10] sm:$0xff] %v108
  %152 = vst [vmem:[%s2 + $0x18] sm:$0xff] %v111
  %153 = vst [vmem:[%s2 + $0x20] sm:$0xff] %v114
  %154 = vst [vmem:[%s2 + $0x28] sm:$0xff] %v117
  %155 = vst [vmem:[%s2 + $0x30] sm:$0xff] %v120
  %156 = vst [vmem:[%s2 + $0x38] sm:$0xff] %v123
  %157 = vst [vmem:[%s2 + $0x40] sm:$0xff] %v126
  %158 = vst [vmem:[%s2 + $0x48] sm:$0xff] %v129
  %159 = vst [vmem:[%s2 + $0x50] sm:$0xff] %v132
  %160 = vst [vmem:[%s2 + $0x58] sm:$0xff] %v135
  %161 = vst [vmem:[%s2 + $0x60] sm:$0xff] %v138
  %162 = vst [vmem:[%s2 + $0x68] sm:$0xff] %v141
  %163 = vst [vmem:[%s2 + $0x70] sm:$0xff] %v144
  %164 = vst [vmem:[%s2 + $0x78] sm:$0xff] %v147
  // Predicated region
  $region10: #{graph_convolution.2} parent=0 // pred_check
    _
  $region11: #{graph_convolution.2} parent=0 // pred_check_branch
    %166 = sbr.rel (0) target = $region13
  $region12: #{graph_convolution.2} parent=0 // pred_region
    _
  $region13: #{graph_convolution.2} parent=0 // pred_fallthru
    _
  // Predicated region
  $region14: #{graph_convolution.2} parent=0 // pred_check
    _
  $region15: #{graph_convolution.2} parent=0 // pred_check_branch
    %168 = sbr.rel (0) target = $region17
  $region16: #{graph_convolution.2} parent=0 // pred_region
    _
  $region17: #{graph_convolution.2} parent=0 // pred_fallthru
    _

</llo_original>
